<compile_context>
chip_gen: v7x
topology: tpu7x:2x2x1
jax: 0.10.0
libtpu: 0.0.40
codegen_flags: <defaults>
</compile_context>

<pallas_src>
import functools

import jax
import jax.numpy as jnp
from jax import lax
from jax.experimental import pallas as pl
from jax.experimental.pallas import tpu as pltpu


def _normalize_kernel(x_ref, g_ref, b_ref, o_ref, *, epsilon, n_features):
    x = x_ref[...].astype(jnp.float32)        # (block_rows, features_padded)
    gain = g_ref[...].astype(jnp.float32)     # (1, features_padded)
    bias = b_ref[...].astype(jnp.float32)     # (1, features_padded)

    fp = x.shape[-1]

    # Mean over the TRUE feature count (padded lanes of x are zero, so sum is exact).
    mu = jnp.sum(x, axis=-1, keepdims=True) * (1.0 / n_features)
    diff = x - mu

    # Exclude padded lanes from the variance (they hold -mu, not real data).
    if fp != n_features:
        lane = lax.broadcasted_iota(jnp.int32, (1, fp), 1)
        diff_v = jnp.where(lane < n_features, diff, 0.0)
    else:
        diff_v = diff

    # Unbiased variance (torch.var default correction=1). For n_features == 1 torch
    # returns NaN; we reproduce that instead of guarding.
    denom = n_features - 1
    inv_denom = (1.0 / denom) if denom > 0 else float("nan")
    var = jnp.sum(diff_v * diff_v, axis=-1, keepdims=True) * inv_denom

    sigma = jnp.sqrt(var + epsilon)
    inv = pl.reciprocal(sigma + epsilon, approx=False)   # per-row (block_rows, 1), EUP

    y = gain * diff * inv + bias
    o_ref[...] = y.astype(o_ref.dtype)


def _sublane_multiple(dtype):
    # Sub-32-bit dtypes pack along sublanes: 8 rows for f32, 16 for bf16, 32 for int8/fp8.
    itemsize = jnp.dtype(dtype).itemsize
    return max(8, 32 // itemsize)


def normalize(x, gain, bias, epsilon=1e-6, target_block_bytes=8 << 20):
    """Applies Normalize along the last axis of x (features = x.shape[-1])."""
    orig_shape = x.shape
    features = orig_shape[-1]
    rows = 1
    for d in orig_shape[:-1]:
        rows *= d

    x2d = x.reshape(rows, features)
    gain2d = gain.reshape(1, features)
    bias2d = bias.reshape(1, features)

    # Lane-dense feature axis: pad up to a multiple of 128 (unmasked vst, full vreg use).
    features_p = max(128, ((features + 127) // 128) * 128)

    # Row blocking: largest sublane-aligned block <= target_block_bytes, capped at the
    # (sublane-rounded) total row count so tiny inputs don't over-allocate.
    sub = _sublane_multiple(x.dtype)
    bytes_per_row = features_p * jnp.dtype(x.dtype).itemsize
    block_rows = max(sub, (target_block_bytes // bytes_per_row) // sub * sub)
    rows_ceil_sub = ((rows + sub - 1) // sub) * sub
    block_rows = min(block_rows, rows_ceil_sub)

    rows_p = ((rows + block_rows - 1) // block_rows) * block_rows

    pad_r = rows_p - rows
    pad_f = features_p - features
    if pad_r or pad_f:
        x2d = jnp.pad(x2d, ((0, pad_r), (0, pad_f)))
    if pad_f:
        gain2d = jnp.pad(gain2d, ((0, 0), (0, pad_f)))
        bias2d = jnp.pad(bias2d, ((0, 0), (0, pad_f)))

    grid = (rows_p // block_rows,)

    kernel = functools.partial(_normalize_kernel, epsilon=epsilon, n_features=features)

    out2d = pl.pallas_call(
        kernel,
        out_shape=jax.ShapeDtypeStruct((rows_p, features_p), x.dtype),
        grid_spec=pltpu.PrefetchScalarGridSpec(
            num_scalar_prefetch=0,
            grid=grid,
            in_specs=[
                pl.BlockSpec((block_rows, features_p), lambda i: (i, 0)),
                pl.BlockSpec((1, features_p), lambda i: (0, 0)),
                pl.BlockSpec((1, features_p), lambda i: (0, 0)),
            ],
            out_specs=pl.BlockSpec((block_rows, features_p), lambda i: (i, 0)),
        ),
        compiler_params=pltpu.CompilerParams(
            dimension_semantics=("parallel",),
            vmem_limit_bytes=48 << 20,
        ),
    )(x2d, gain2d, bias2d)

    if pad_r or pad_f:
        out2d = out2d[:rows, :features]
    return out2d.reshape(orig_shape)


def _reference(x, gain, bias, epsilon):
    n = x.shape[-1]
    mu = jnp.mean(x, axis=-1, keepdims=True)
    var = jnp.sum((x - mu) ** 2, axis=-1, keepdims=True) / (n - 1)
    sigma = jnp.sqrt(var + epsilon)
    return gain * (x - mu) / (sigma + epsilon) + bias


if __name__ == "__main__":
    epsilon = 1e-6
    key = jax.random.PRNGKey(0)
    k1, k2, k3 = jax.random.split(key, 3)

    # Case 1: small shape implied by the module (batch, seq, hidden); features < 128
    # exercises the lane-padding + variance-masking path.
    batch, seq, hidden = 2, 8, 32
    x = jax.random.normal(k1, (batch, seq, hidden), dtype=jnp.float32)
    gain = jnp.ones((hidden,), dtype=jnp.float32)
    bias = jnp.zeros((hidden,), dtype=jnp.float32)

    out = normalize(x, gain, bias, epsilon=epsilon)
    out = jax.block_until_ready(out)
    ref = _reference(x, gain, bias, epsilon)
    assert out.shape == x.shape and out.dtype == x.dtype
    assert jnp.max(jnp.abs(out - ref)) < 1e-5

    # Case 2: non-aligned rows and features (row-pad + feature-pad tail handling),
    # with non-trivial gain/bias.
    b2, s2, h2 = 3, 7, 96
    x2 = jax.random.normal(k2, (b2, s2, h2), dtype=jnp.float32)
    gain2 = 1.0 + 0.1 * jax.random.normal(k3, (h2,), dtype=jnp.float32)
    bias2 = 0.05 * jnp.arange(h2, dtype=jnp.float32)

    out2 = normalize(x2, gain2, bias2, epsilon=epsilon)
    out2 = jax.block_until_ready(out2)
    ref2 = _reference(x2, gain2, bias2, epsilon)
    assert out2.shape == x2.shape and out2.dtype == x2.dtype
    assert jnp.max(jnp.abs(out2 - ref2)) < 1e-5

    print("KERNEL_OK")
</pallas_src>

<mosaic_0001>
module attributes {stable_mosaic.version = 11 : i64} {
  func.func @_normalize_kernel(%arg0: i32, %arg1: memref<16x128xf32, #tpu.memory_space<vmem>>, %arg2: memref<1x128xf32, #tpu.memory_space<vmem>>, %arg3: memref<1x128xf32, #tpu.memory_space<vmem>>, %arg4: memref<16x128xf32, #tpu.memory_space<vmem>>) attributes {dimension_semantics = [#tpu.dimension_semantics<parallel>], iteration_bounds = array<i64: 1>, scalar_prefetch = 0 : i64, scratch_operands = 0 : i64, tpu.core_type = #tpu.core_type<tc>, window_params = [{transform_indices = @transform_0, window_bounds = array<i64: 16, 128>}, {pipeline_mode = #tpu.pipeline_mode<synchronous>, transform_indices = @transform_1, window_bounds = array<i64: 1, 128>}, {pipeline_mode = #tpu.pipeline_mode<synchronous>, transform_indices = @transform_2, window_bounds = array<i64: 1, 128>}, {transform_indices = @transform_3, window_bounds = array<i64: 16, 128>}]} {
    %c0 = arith.constant 0 : index
    %c0_0 = arith.constant 0 : index
    %0 = vector.load %arg1[%c0, %c0_0] : memref<16x128xf32, #tpu.memory_space<vmem>>, vector<16x128xf32>
    %c0_1 = arith.constant 0 : index
    %c0_2 = arith.constant 0 : index
    %1 = vector.load %arg2[%c0_1, %c0_2] : memref<1x128xf32, #tpu.memory_space<vmem>>, vector<1x128xf32>
    %c0_3 = arith.constant 0 : index
    %c0_4 = arith.constant 0 : index
    %2 = vector.load %arg3[%c0_3, %c0_4] : memref<1x128xf32, #tpu.memory_space<vmem>>, vector<1x128xf32>
    %cst = arith.constant dense<0.000000e+00> : vector<16xf32>
    %3 = vector.multi_reduction <add>, %0, %cst [1] : vector<16x128xf32> to vector<16xf32>
    %4 = vector.shape_cast %3 : vector<16xf32> to vector<16x1xf32>
    %cst_5 = arith.constant 3.125000e-02 : f32
    %5 = vector.broadcast %cst_5 : f32 to vector<16x1xf32>
    %6 = arith.mulf %4, %5 : vector<16x1xf32>
    %7 = vector.broadcast %6 : vector<16x1xf32> to vector<16x128xf32>
    %8 = arith.subf %0, %7 : vector<16x128xf32>
    %9 = tpu.iota {dimensions = array<i32: 1>} : vector<1x128xi32>
    %c32_i32 = arith.constant 32 : i32
    %10 = vector.broadcast %c32_i32 : i32 to vector<1x128xi32>
    %11 = arith.cmpi slt, %9, %10 : vector<1x128xi32>
    %cst_6 = arith.constant 0.000000e+00 : f32
    %12 = vector.shape_cast %11 : vector<1x128xi1> to vector<1x128xi1>
    %13 = vector.broadcast %12 : vector<1x128xi1> to vector<16x128xi1>
    %14 = vector.broadcast %cst_6 : f32 to vector<16x128xf32>
    %15 = arith.select %13, %8, %14 : vector<16x128xi1>, vector<16x128xf32>
    %16 = arith.mulf %15, %15 : vector<16x128xf32>
    %cst_7 = arith.constant dense<0.000000e+00> : vector<16xf32>
    %17 = vector.multi_reduction <add>, %16, %cst_7 [1] : vector<16x128xf32> to vector<16xf32>
    %18 = vector.shape_cast %17 : vector<16xf32> to vector<16x1xf32>
    %cst_8 = arith.constant 0.0322580636 : f32
    %19 = vector.broadcast %cst_8 : f32 to vector<16x1xf32>
    %20 = arith.mulf %18, %19 : vector<16x1xf32>
    %cst_9 = arith.constant 9.99999997E-7 : f32
    %21 = vector.broadcast %cst_9 : f32 to vector<16x1xf32>
    %22 = arith.addf %20, %21 : vector<16x1xf32>
    %23 = math.sqrt %22 : vector<16x1xf32>
    %cst_10 = arith.constant 9.99999997E-7 : f32
    %24 = vector.broadcast %cst_10 : f32 to vector<16x1xf32>
    %25 = arith.addf %23, %24 : vector<16x1xf32>
    %26 = tpu.reciprocal %25 : vector<16x1xf32> -> vector<16x1xf32>
    %27 = vector.broadcast %1 : vector<1x128xf32> to vector<16x128xf32>
    %28 = arith.mulf %27, %8 : vector<16x128xf32>
    %29 = vector.broadcast %26 : vector<16x1xf32> to vector<16x128xf32>
    %30 = arith.mulf %28, %29 : vector<16x128xf32>
    %31 = vector.broadcast %2 : vector<1x128xf32> to vector<16x128xf32>
    %32 = arith.addf %30, %31 : vector<16x128xf32>
    %c0_11 = arith.constant 0 : index
    %c0_12 = arith.constant 0 : index
    %33 = vector.load %arg4[%c0_11, %c0_12] : memref<16x128xf32, #tpu.memory_space<vmem>>, vector<16x128xf32>
    tpu.vector_store %arg4[%c0_11, %c0_12], %32 {strides = array<i32>} : memref<16x128xf32, #tpu.memory_space<vmem>>, vector<16x128xf32>,
    return
  }
  func.func @transform_0(%arg0: i32) -> (i32, i32) {
    %c0_i32 = arith.constant 0 : i32
    %c0_i32_0 = arith.constant 0 : i32
    return %arg0, %c0_i32 : i32, i32
  }
  func.func @transform_1(%arg0: i32) -> (i32, i32) {
    %c0_i32 = arith.constant 0 : i32
    %c0_i32_0 = arith.constant 0 : i32
    %c0_i32_1 = arith.constant 0 : i32
    return %c0_i32, %c0_i32_0 : i32, i32
  }
  func.func @transform_2(%arg0: i32) -> (i32, i32) {
    %c0_i32 = arith.constant 0 : i32
    %c0_i32_0 = arith.constant 0 : i32
    %c0_i32_1 = arith.constant 0 : i32
    return %c0_i32, %c0_i32_0 : i32, i32
  }
  func.func @transform_3(%arg0: i32) -> (i32, i32) {
    %c0_i32 = arith.constant 0 : i32
    %c0_i32_0 = arith.constant 0 : i32
    return %arg0, %c0_i32 : i32, i32
  }
}

</mosaic_0001>

<llo_original>
// kernel: tpu_custom_call.1
$region0: #{tpu_custom_call.1}
  #allocation0 [shape = 'u32[]', space=smem, size = 0x4, offset = 0x4, fixed_abs, tag = 'smem constant byte address 0x4 - core index']
  #allocation1 [shape = 'u32[144,128]{1,0:T(1,128)}', space=vmem, size = 0x12000, scoped, tag = 'internal scratch']
  %s0 = inlined_call_operand.hbm [shape: f32[16,128], index: 0, kind: input, shape index: {}]
  %s1 = inlined_call_operand.vmem [shape: f32[1,128], index: 1, kind: input, shape index: {}]
  %s2 = inlined_call_operand.vmem [shape: f32[1,128], index: 2, kind: input, shape index: {}]
  %s3 = inlined_call_operand.hbm [shape: f32[16,128], index: 3, kind: output, shape index: {}]
  %s4 = sld [smem:[#allocation0]]
  $region26: #{tpu_custom_call.1} parent=0
    _
  %s6 = ssub.s32 1, %s4
  %s7 = scalar_select 0, %s6, %s4
  $region1: #{tpu_custom_call.1} parent=0
    #allocation2 [shape = 'u8[8192]{0}', space=vmem, size = 0x2000, scoped, tag = 'input window, operand 0, single buffered']
    #allocation3 [shape = 's32[1]{0}', space=sflag, size = 0x4, scoped, tag = 'scoped memory for tpu_custom_call.1']
    #allocation4 [shape = 's32[1]{0}', space=sflag, size = 0x4, scoped, tag = 'scoped memory for tpu_custom_call.1']
    #allocation5 [shape = 'u8[8192]{0}', space=vmem, size = 0x2000, scoped, tag = 'output window, operand 0, single buffered']
    %8 = vsyncpa [#allocation3], 0
    %9 = vsyncpa [#allocation4], 0
    // Predicated region
    $region2: #{tpu_custom_call.1} parent=1 // pred_check
      _
    $region3: #{tpu_custom_call.1} parent=1 // pred_check_branch
      %11 = sbr.rel (0) target = $region5
    $region4: #{tpu_custom_call.1} parent=1 // pred_region
      %s13 = ssub.s32 256, 256
      %14 = vsyncadd [#allocation3], %s13
      %s15 = sshll.u32 [#allocation2], 4
      %s16 = int_to_ptr.vmem [resolvable:$true] %s15
      %21 = dma.hbm_to_vmem [thread:$0]  %s0, 256, %s16, [#allocation3], 128, 128, 8
    $region5: #{tpu_custom_call.1} parent=1 // pred_fallthru
      _
    // Predicated region
    $region6: #{tpu_custom_call.1} parent=1 // pred_check
      _
    $region7: #{tpu_custom_call.1} parent=1 // pred_check_branch
      %23 = sbr.rel (0) target = $region9
    $region8: #{tpu_custom_call.1} parent=1 // pred_region
      _
    $region9: #{tpu_custom_call.1} parent=1 // pred_fallthru
      _
    // Predicated region
    $region10: #{tpu_custom_call.1} parent=1 // pred_check
      _
    $region11: #{tpu_custom_call.1} parent=1 // pred_check_branch
      %25 = sbr.rel (0) target = $region13
    $region12: #{tpu_custom_call.1} parent=1 // pred_region
      _
    $region13: #{tpu_custom_call.1} parent=1 // pred_fallthru
      _
    // Predicated region
    $region14: #{tpu_custom_call.1} parent=1 // pred_check
      _
    $region15: #{tpu_custom_call.1} parent=1 // pred_check_branch
      %27 = sbr.rel (0) target = $region17
    $region16: #{tpu_custom_call.1} parent=1 // pred_region
      %28 = dma.done [#allocation3], 256
    $region17: #{tpu_custom_call.1} parent=1 // pred_fallthru
      _
    %v29 = vld [vmem:[#allocation2] sm:$0xff]
    %v30 = vld [vmem:[#allocation2 + $0x8] sm:$0xff]
    %v31 = vld [vmem:[%s1] sm:$0x1]
    %v32 = vld [vmem:[%s2] sm:$0x1]
    %33 = vadd.xlane.f32.xlu0 %v29
    %v34 = vpop.xlane.xlu0 %33
    %35 = vadd.xlane.f32.xlu0 %v30
    %v36 = vpop.xlane.xlu0 %35
    %v37 = vmul.f32 %v34, 0.03125
    %v38 = vmul.f32 %v36, 0.03125
    %v39 = vsub.f32 %v29, %v37
    %v40 = vsub.f32 %v30, %v38
    %v41 = vlaneseq
    %v42 = vand.u32 %v41, 127
    %vm43 = vcmp.lt.s32.totalorder %v42, 32
    %v44 = vsel %vm43, 1, 0
    %vm45 = vcmp.eq.s32.totalorder %v44, 1
    %v46 = vsel %vm45, %v39, 0.0
    %v47 = vsel %vm45, %v40, 0.0
    %v48 = vmul.f32 %v46, %v46
    %v49 = vmul.f32 %v47, %v47
    %50 = vadd.xlane.f32.xlu0 %v48
    %v51 = vpop.xlane.xlu0 %50
    %52 = vadd.xlane.f32.xlu0 %v49
    %v53 = vpop.xlane.xlu0 %52
    %v54 = vmul.f32 %v51, 0.032258064
    %v55 = vmul.f32 %v53, 0.032258064
    %v56 = vadd.f32 %v54, 1e-06
    %v57 = vadd.f32 %v55, 1e-06
    %v58 = vrsqrt.pop %v56
    %v59 = vmul.f32 %v56, %v58
    %vm60 = vcmp.eq.f32.partialorder %v56, inf
    %v61 = vsel %vm60, %v56, %v59
    %vm62 = vcmp.eq.f32.partialorder %v56, 0.0
    %v63 = vand.u32 %v56, 2147483648
    %v64 = vsel %vm62, %v63, %v61
    %v65 = vrsqrt.pop %v57
    %v66 = vmul.f32 %v57, %v65
    %vm67 = vcmp.eq.f32.partialorder %v57, inf
    %v68 = vsel %vm67, %v57, %v66
    %vm69 = vcmp.eq.f32.partialorder %v57, 0.0
    %v70 = vand.u32 %v57, 2147483648
    %v71 = vsel %vm69, %v70, %v68
    %v72 = vadd.f32 %v64, 1e-06
    %v73 = vadd.f32 %v71, 1e-06
    %v74 = vrcp.pop %v72
    %v75 = vrcp.pop %v73
    %v77 = vlaneseq
    %v78 = vshrl.u32 %v77, 7
    %v79 = vsub.s32 0, %v78
    %v80 = vrot.slane %v31, %v79
    %v82 = vmul.f32 %v80, %v39
    %v83 = vmul.f32 %v80, %v40
    %v84 = vmul.f32 %v82, %v74
    %v85 = vmul.f32 %v83, %v75
    %v87 = vlaneseq
    %v88 = vshrl.u32 %v87, 7
    %v89 = vsub.s32 0, %v88
    %v90 = vrot.slane %v32, %v89
    %v92 = vadd.f32 %v84, %v90
    %v93 = vadd.f32 %v85, %v90
    %94 = vst [vmem:[#allocation5] sm:$0xff] %v92
    %95 = vst [vmem:[#allocation5 + $0x8] sm:$0xff] %v93
    // Predicated region
    $region18: #{tpu_custom_call.1} parent=1 // pred_check
      _
    $region19: #{tpu_custom_call.1} parent=1 // pred_check_branch
      %97 = sbr.rel (0) target = $region21
    $region20: #{tpu_custom_call.1} parent=1 // pred_region
      %s99 = ssub.s32 256, 256
      %100 = vsyncadd [#allocation4], %s99
      %s101 = sshll.u32 [#allocation5], 4
      %s102 = int_to_ptr.vmem [resolvable:$true] %s101
      %107 = dma.vmem_to_hbm [thread:$0]  %s102, 256, %s3, [#allocation4], 128, 128, 8
    $region21: #{tpu_custom_call.1} parent=1 // pred_fallthru
      _
    // Predicated region
    $region22: #{tpu_custom_call.1} parent=1 // pred_check
      _
    $region23: #{tpu_custom_call.1} parent=1 // pred_check_branch
      %109 = sbr.rel (0) target = $region25
    $region24: #{tpu_custom_call.1} parent=1 // pred_region
      %110 = dma.done [#allocation4], 256
    $region25: #{tpu_custom_call.1} parent=1 // pred_fallthru
      _
    %111 = vsyncpa [#allocation3], 1
    %112 = vsyncpa [#allocation4], 1

</llo_original>
